<compile_context>
chip_gen: v6e
topology: v6e:2x2x1
jax: 0.10.0
libtpu: 0.0.40
codegen_flags: <defaults>
</compile_context>

<pallas_src>
import jax
import jax.numpy as jnp
from jax.experimental import pallas as pl
from jax.experimental.pallas import tpu as pltpu


# --------------------------------------------------------------------------- utilities
def _round_up(n, m):
    return ((n + m - 1) // m) * m


def _pad2(a, rows, cols):
    """Zero-pad a 2-D array up to (rows, cols)."""
    return jnp.pad(a, ((0, rows - a.shape[0]), (0, cols - a.shape[1])))


# --------------------------------------------------------------------- fused MLP kernel
def _make_mlp_kernel(n_inputs, n_layers, relu_flags, epilogue):
    """out = L_{n-1}( ... relu(L_0(x_0,...,x_{k-1})) ... ), optional fused sigma epilogue."""

    def kernel(*refs):
        out_ref = refs[-1]
        pos = n_inputs
        # Layer 0: split-input matmul (replaces the torch.cat + single Linear).
        acc = jnp.dot(refs[0][...], refs[pos][...], preferred_element_type=jnp.float32)
        for j in range(1, n_inputs):
            acc = acc + jnp.dot(refs[j][...], refs[pos + j][...],
                                preferred_element_type=jnp.float32)
        pos += n_inputs
        acc = acc + refs[pos][...]
        pos += 1
        if relu_flags[0]:
            acc = jnp.maximum(acc, 0.0)
        # Remaining layers.
        for l in range(1, n_layers):
            acc = jnp.dot(acc, refs[pos][...], preferred_element_type=jnp.float32)
            acc = acc + refs[pos + 1][...]
            pos += 2
            if relu_flags[l]:
                acc = jnp.maximum(acc, 0.0)
        # Optional fused head epilogue: columns < split_col are mu (identity),
        # columns >= split_col are sigma = 0.1 + 0.9 * act(pre_sigma).
        if epilogue is not None:
            kind, split_col = epilogue
            e = jnp.exp(-jnp.abs(acc))                                 # EUP (free slot)
            if kind == "sigmoid":
                act = jnp.where(acc >= 0.0, 1.0 / (1.0 + e), e / (1.0 + e))
            else:  # "softplus" (numerically stable form)
                act = jnp.maximum(acc, 0.0) + jnp.log1p(e)
            sig = 0.1 + 0.9 * act
            col = jax.lax.broadcasted_iota(jnp.int32, acc.shape, 1)
            acc = jnp.where(col < split_col, acc, sig)
        out_ref[...] = acc.astype(out_ref.dtype)

    return kernel


def mlp_pallas(inputs, layers, relu_flags, *, epilogue=None, tile_b=None):
    """Fused MLP on TPU via Pallas.

    inputs:     list of (B, d_j) arrays (first layer consumes them jointly, no concat).
    layers:     [([W0_j for each input], b0), (W1, b1), ...]; weights stored [in, out].
    relu_flags: per-layer bool -> apply ReLU after that layer's bias add.
    epilogue:   None, or ("sigmoid"|"softplus", split_col) applied in-kernel to the
                columns >= split_col of the final layer (sigma heads).
    Returns (B, out_dim) with out_dim = len(last bias).
    """
    B = inputs[0].shape[0]
    dtype = inputs[0].dtype
    n_inputs = len(inputs)
    n_layers = len(layers)

    # ---- lane padding: every hidden / output width -> multiple of 128 (exact, zeros) ----
    widths = [layers[l][1].shape[-1] for l in range(n_layers)]
    pad_widths = [_round_up(w, 128) for w in widths]

    # ---- pad tiny input feature dims to a multiple of 8 (sublane-friendly K) ----
    d_pads = [_round_up(x.shape[1], 8) for x in inputs]

    # ---- batch tiling: large tiles, zero-pad batch to the tile ----
    if tile_b is None:
        tile_b = min(512, _round_up(B, 8))
    B_pad = _round_up(B, tile_b)

    ins_p = [jnp.pad(x, ((0, B_pad - B), (0, d_pads[j] - x.shape[1])))
             for j, x in enumerate(inputs)]

    w0_list, b0 = layers[0]
    w0_p = [_pad2(w, d_pads[j], pad_widths[0]) for j, w in enumerate(w0_list)]
    b0_p = _pad2(b0.reshape(1, -1), 1, pad_widths[0])
    rest_p = []
    for l in range(1, n_layers):
        w, b = layers[l]
        rest_p.append(_pad2(w, pad_widths[l - 1], pad_widths[l]))
        rest_p.append(_pad2(b.reshape(1, -1), 1, pad_widths[l]))

    grid = (B_pad // tile_b,)
    out_w = pad_widths[-1]

    in_arrays = ins_p + w0_p + [b0_p] + rest_p
    in_specs = (
        [pl.BlockSpec((tile_b, x.shape[1]), lambda i: (i, 0)) for x in ins_p]
        + [pl.BlockSpec(w.shape, lambda i: (0, 0)) for w in (w0_p + [b0_p] + rest_p)]
    )
    out_spec = pl.BlockSpec((tile_b, out_w), lambda i: (i, 0))

    # ---- advisory cost estimate for the XLA scheduler ----
    flops = 0
    for w in w0_p:
        flops += 2 * B_pad * w.shape[0] * w.shape[1]
    for l in range(1, n_layers):
        flops += 2 * B_pad * pad_widths[l - 1] * pad_widths[l]
    itemsize = jnp.dtype(dtype).itemsize
    bytes_accessed = sum(int(a.size) * a.dtype.itemsize for a in in_arrays)
    bytes_accessed += B_pad * out_w * itemsize
    transcendentals = (2 * B_pad * out_w) if epilogue is not None else 0

    kernel = _make_mlp_kernel(n_inputs, n_layers, tuple(relu_flags), epilogue)

    out = pl.pallas_call(
        kernel,
        out_shape=jax.ShapeDtypeStruct((B_pad, out_w), dtype),
        grid_spec=pltpu.PrefetchScalarGridSpec(
            num_scalar_prefetch=0,
            grid=grid,
            in_specs=in_specs,
            out_specs=out_spec,
        ),
        compiler_params=pltpu.CompilerParams(
            dimension_semantics=("parallel",),
            vmem_limit_bytes=48 * 1024 * 1024,  # headroom under v7x 64 MiB VMEM
        ),
        cost_estimate=pl.CostEstimate(
            flops=flops, transcendentals=transcendentals, bytes_accessed=bytes_accessed),
    )(*in_arrays)

    return out[:B, :widths[-1]]


# ------------------------------------------------------------------- NeuralProcessImg
def xy_to_mu_sigma_pair(enc_params, ms_params, x_t, y_t, x_c, y_c):
    """q(z | target) and q(z | context) with ONE encoder call and ONE mu/sigma call."""
    b, nt, x_dim = x_t.shape
    _, nc, _ = x_c.shape
    y_dim = y_t.shape[-1]
    w1, b1, w2, b2, w3, b3 = enc_params
    r_dim = b3.shape[-1]

    # --- Encoder over all (target + context) points in a single Pallas call ---
    x_all = jnp.concatenate(
        [x_t.reshape(b * nt, x_dim), x_c.reshape(b * nc, x_dim)], axis=0)
    y_all = jnp.concatenate(
        [y_t.reshape(b * nt, y_dim), y_c.reshape(b * nc, y_dim)], axis=0)
    r_all = mlp_pallas(
        [x_all, y_all],
        [([w1[:x_dim], w1[x_dim:]], b1), (w2, b2), (w3, b3)],
        [True, True, False],
    )
    r_t = r_all[:b * nt].reshape(b, nt, r_dim).mean(axis=1)   # aggregate (glue)
    r_c = r_all[b * nt:].reshape(b, nc, r_dim).mean(axis=1)

    # --- MuSigmaEncoder on [r_target; r_context] in a single Pallas call ---
    wr, br, wmu, bmu, wsig, bsig = ms_params
    z_dim = wmu.shape[1]
    w_heads = jnp.concatenate([wmu, wsig], axis=1)             # fuse the two heads
    b_heads = jnp.concatenate([bmu, bsig], axis=0)
    r_stack = jnp.concatenate([r_t, r_c], axis=0)              # (2b, r_dim)
    out = mlp_pallas(
        [r_stack],
        [([wr], br), (w_heads, b_heads)],
        [True, False],
        epilogue=("sigmoid", z_dim),                           # sigma = 0.1+0.9*sigmoid
    )
    mu, sigma = out[:, :z_dim], out[:, z_dim:2 * z_dim]
    return (mu[:b], sigma[:b]), (mu[b:], sigma[b:])


def decoder(dec_params, x, z):
    """Decoder: (x_target, z) -> (mu, sigma) over y_target."""
    w1, b1, w2, b2, w3, b3, wmu, bmu, wsig, bsig = dec_params
    b, n, x_dim = x.shape
    z_dim = z.shape[-1]
    y_dim = wmu.shape[1]
    x_flat = x.reshape(b * n, x_dim)
    z_flat = jnp.broadcast_to(z[:, None, :], (b, n, z_dim)).reshape(b * n, z_dim)
    w_heads = jnp.concatenate([wmu, wsig], axis=1)
    b_heads = jnp.concatenate([bmu, bsig], axis=0)
    out = mlp_pallas(
        [x_flat, z_flat],
        [([w1[:x_dim], w1[x_dim:]], b1), (w2, b2), (w3, b3), (w_heads, b_heads)],
        [True, True, True, False],
        epilogue=("softplus", y_dim),                          # sigma = 0.1+0.9*softplus
    )
    mu = out[:, :y_dim].reshape(b, n, y_dim)
    sigma = out[:, y_dim:2 * y_dim].reshape(b, n, y_dim)
    return mu, sigma


def neural_process_img_forward(params, x_context, y_context, x_target, y_target, eps):
    """Training-mode forward of NeuralProcessImg (returns distribution parameters)."""
    enc_p, ms_p, dec_p = params
    (mu_t, sigma_t), (mu_c, sigma_c) = xy_to_mu_sigma_pair(
        enc_p, ms_p, x_target, y_target, x_context, y_context)
    z = mu_t + sigma_t * eps                                   # rsample (reparam., glue)
    y_mu, y_sigma = decoder(dec_p, x_target, z)                # p(y | x_target, z)
    return (y_mu, y_sigma), (mu_t, sigma_t), (mu_c, sigma_c)


# ------------------------------------------------------------------ params / reference
def init_np_params(key, x_dim, y_dim, r_dim, z_dim, h_dim, dtype=jnp.float32):
    ks = iter(jax.random.split(key, 32))

    def lin(d_in, d_out, scale=0.2):
        w = jax.random.normal(next(ks), (d_in, d_out), dtype) * scale
        b = jax.random.normal(next(ks), (d_out,), dtype) * scale
        return w, b

    w1, b1 = lin(x_dim + y_dim, h_dim)
    w2, b2 = lin(h_dim, h_dim)
    w3, b3 = lin(h_dim, r_dim)
    enc = (w1, b1, w2, b2, w3, b3)

    wr, br = lin(r_dim, r_dim)
    wmu, bmu = lin(r_dim, z_dim)
    wsig, bsig = lin(r_dim, z_dim)
    ms = (wr, br, wmu, bmu, wsig, bsig)

    dw1, db1 = lin(x_dim + z_dim, h_dim)
    dw2, db2 = lin(h_dim, h_dim)
    dw3, db3 = lin(h_dim, h_dim)
    dwmu, dbmu = lin(h_dim, y_dim)
    dwsig, dbsig = lin(h_dim, y_dim)
    dec = (dw1, db1, dw2, db2, dw3, db3, dwmu, dbmu, dwsig, dbsig)
    return enc, ms, dec


def reference_forward(params, x_context, y_context, x_target, y_target, eps):
    """Pure-JAX mirror of the PyTorch module (same math, torch.cat kept)."""
    enc, ms, dec = params
    w1, b1, w2, b2, w3, b3 = enc
    wr, br, wmu, bmu, wsig, bsig = ms
    dw1, db1, dw2, db2, dw3, db3, dwmu, dbmu, dwsig, dbsig = dec

    def _xy_to_mu_sigma(x, y):
        b, n, xd = x.shape
        inp = jnp.concatenate([x.reshape(b * n, xd), y.reshape(b * n, -1)], axis=1)
        h = jax.nn.relu(inp @ w1 + b1)
        h = jax.nn.relu(h @ w2 + b2)
        r = (h @ w3 + b3).reshape(b, n, -1).mean(axis=1)
        hid = jax.nn.relu(r @ wr + br)
        mu = hid @ wmu + bmu
        sigma = 0.1 + 0.9 * jax.nn.sigmoid(hid @ wsig + bsig)
        return mu, sigma

    mu_t, sig_t = _xy_to_mu_sigma(x_target, y_target)
    mu_c, sig_c = _xy_to_mu_sigma(x_context, y_context)
    z = mu_t + sig_t * eps
    b, n, xd = x_target.shape
    z_flat = jnp.broadcast_to(z[:, None, :], (b, n, z.shape[-1])).reshape(b * n, -1)
    inp = jnp.concatenate([x_target.reshape(b * n, xd), z_flat], axis=1)
    h = jax.nn.relu(inp @ dw1 + db1)
    h = jax.nn.relu(h @ dw2 + db2)
    h = jax.nn.relu(h @ dw3 + db3)
    y_mu = (h @ dwmu + dbmu).reshape(b, n, -1)
    y_sig = 0.1 + 0.9 * jax.nn.softplus((h @ dwsig + dbsig).reshape(b, n, -1))
    return (y_mu, y_sig), (mu_t, sig_t), (mu_c, sig_c)


# --------------------------------------------------------------------------------- main
if __name__ == "__main__":
    # NeuralProcessImg fixes x_dim=2 (pixel coords), y_dim=1 (grayscale intensity).
    x_dim, y_dim = 2, 1
    r_dim, z_dim, h_dim = 16, 8, 32
    batch, num_context, num_target = 2, 24, 64

    key = jax.random.PRNGKey(0)
    k_xt, k_yt, k_p, k_eps = jax.random.split(key, 4)
    x_target = jax.random.uniform(k_xt, (batch, num_target, x_dim), jnp.float32)
    y_target = jax.random.uniform(k_yt, (batch, num_target, y_dim), jnp.float32)
    x_context = x_target[:, :num_context]          # context is a subset of target
    y_context = y_target[:, :num_context]
    params = init_np_params(k_p, x_dim, y_dim, r_dim, z_dim, h_dim)
    eps = jax.random.normal(k_eps, (batch, z_dim), jnp.float32)   # shared rsample noise

    out = neural_process_img_forward(params, x_context, y_context, x_target, y_target, eps)
    out = jax.block_until_ready(out)
    (y_mu, y_sigma), (mu_t, sig_t), (mu_c, sig_c) = out

    ref = reference_forward(params, x_context, y_context, x_target, y_target, eps)
    (ry_mu, ry_sigma), (rmu_t, rsig_t), (rmu_c, rsig_c) = ref

    assert y_mu.shape == (batch, num_target, y_dim)
    assert y_sigma.shape == (batch, num_target, y_dim)
    assert mu_t.shape == (batch, z_dim) and mu_c.shape == (batch, z_dim)
    for a, b in [(y_mu, ry_mu), (y_sigma, ry_sigma), (mu_t, rmu_t),
                 (sig_t, rsig_t), (mu_c, rmu_c), (sig_c, rsig_c)]:
        assert jnp.allclose(a, b, atol=1e-4, rtol=1e-4)

    print("KERNEL_OK")
</pallas_src>

<mosaic_0001>
module attributes {stable_mosaic.version = 11 : i64} {
  func.func @kernel(%arg0: i32, %arg1: memref<176x8xf32, #tpu.memory_space<vmem>>, %arg2: memref<176x8xf32, #tpu.memory_space<vmem>>, %arg3: memref<8x128xf32, #tpu.memory_space<vmem>>, %arg4: memref<8x128xf32, #tpu.memory_space<vmem>>, %arg5: memref<1x128xf32, #tpu.memory_space<vmem>>, %arg6: memref<128x128xf32, #tpu.memory_space<vmem>>, %arg7: memref<1x128xf32, #tpu.memory_space<vmem>>, %arg8: memref<128x128xf32, #tpu.memory_space<vmem>>, %arg9: memref<1x128xf32, #tpu.memory_space<vmem>>, %arg10: memref<176x128xf32, #tpu.memory_space<vmem>>) attributes {dimension_semantics = [#tpu.dimension_semantics<parallel>], iteration_bounds = array<i64: 1>, scalar_prefetch = 0 : i64, scratch_operands = 0 : i64, tpu.core_type = #tpu.core_type<tc>, window_params = [{transform_indices = @transform_0, window_bounds = array<i64: 176, 8>}, {transform_indices = @transform_1, window_bounds = array<i64: 176, 8>}, {pipeline_mode = #tpu.pipeline_mode<synchronous>, transform_indices = @transform_2, window_bounds = array<i64: 8, 128>}, {pipeline_mode = #tpu.pipeline_mode<synchronous>, transform_indices = @transform_3, window_bounds = array<i64: 8, 128>}, {pipeline_mode = #tpu.pipeline_mode<synchronous>, transform_indices = @transform_4, window_bounds = array<i64: 1, 128>}, {pipeline_mode = #tpu.pipeline_mode<synchronous>, transform_indices = @transform_5, window_bounds = array<i64: 128, 128>}, {pipeline_mode = #tpu.pipeline_mode<synchronous>, transform_indices = @transform_6, window_bounds = array<i64: 1, 128>}, {pipeline_mode = #tpu.pipeline_mode<synchronous>, transform_indices = @transform_7, window_bounds = array<i64: 128, 128>}, {pipeline_mode = #tpu.pipeline_mode<synchronous>, transform_indices = @transform_8, window_bounds = array<i64: 1, 128>}, {transform_indices = @transform_9, window_bounds = array<i64: 176, 128>}]} {
    %c0 = arith.constant 0 : index
    %c0_0 = arith.constant 0 : index
    %0 = vector.load %arg1[%c0, %c0_0] : memref<176x8xf32, #tpu.memory_space<vmem>>, vector<176x8xf32>
    %c0_1 = arith.constant 0 : index
    %c0_2 = arith.constant 0 : index
    %1 = vector.load %arg3[%c0_1, %c0_2] : memref<8x128xf32, #tpu.memory_space<vmem>>, vector<8x128xf32>
    %cst = arith.constant dense<0.000000e+00> : vector<176x128xf32>
    %2 = tpu.matmul %0, %1, %cst {dimension_numbers = #tpu.dot_dimension_numbers<[1], [0], [0], [1], [0, 0, 1, 1], [], []>} : vector<176x8xf32>, vector<8x128xf32>, vector<176x128xf32> -> vector<176x128xf32>
    %c0_3 = arith.constant 0 : index
    %c0_4 = arith.constant 0 : index
    %3 = vector.load %arg2[%c0_3, %c0_4] : memref<176x8xf32, #tpu.memory_space<vmem>>, vector<176x8xf32>
    %c0_5 = arith.constant 0 : index
    %c0_6 = arith.constant 0 : index
    %4 = vector.load %arg4[%c0_5, %c0_6] : memref<8x128xf32, #tpu.memory_space<vmem>>, vector<8x128xf32>
    %cst_7 = arith.constant dense<0.000000e+00> : vector<176x128xf32>
    %5 = tpu.matmul %3, %4, %cst_7 {dimension_numbers = #tpu.dot_dimension_numbers<[1], [0], [0], [1], [0, 0, 1, 1], [], []>} : vector<176x8xf32>, vector<8x128xf32>, vector<176x128xf32> -> vector<176x128xf32>
    %6 = arith.addf %2, %5 : vector<176x128xf32>
    %c0_8 = arith.constant 0 : index
    %c0_9 = arith.constant 0 : index
    %7 = vector.load %arg5[%c0_8, %c0_9] : memref<1x128xf32, #tpu.memory_space<vmem>>, vector<1x128xf32>
    %8 = vector.broadcast %7 : vector<1x128xf32> to vector<176x128xf32>
    %9 = arith.addf %6, %8 : vector<176x128xf32>
    %cst_10 = arith.constant 0.000000e+00 : f32
    %10 = vector.broadcast %cst_10 : f32 to vector<176x128xf32>
    %11 = arith.maximumf %9, %10 : vector<176x128xf32>
    %c0_11 = arith.constant 0 : index
    %c0_12 = arith.constant 0 : index
    %12 = vector.load %arg6[%c0_11, %c0_12] : memref<128x128xf32, #tpu.memory_space<vmem>>, vector<128x128xf32>
    %cst_13 = arith.constant dense<0.000000e+00> : vector<176x128xf32>
    %13 = tpu.matmul %11, %12, %cst_13 {dimension_numbers = #tpu.dot_dimension_numbers<[1], [0], [0], [1], [0, 0, 1, 1], [], []>} : vector<176x128xf32>, vector<128x128xf32>, vector<176x128xf32> -> vector<176x128xf32>
    %c0_14 = arith.constant 0 : index
    %c0_15 = arith.constant 0 : index
    %14 = vector.load %arg7[%c0_14, %c0_15] : memref<1x128xf32, #tpu.memory_space<vmem>>, vector<1x128xf32>
    %15 = vector.broadcast %14 : vector<1x128xf32> to vector<176x128xf32>
    %16 = arith.addf %13, %15 : vector<176x128xf32>
    %cst_16 = arith.constant 0.000000e+00 : f32
    %17 = vector.broadcast %cst_16 : f32 to vector<176x128xf32>
    %18 = arith.maximumf %16, %17 : vector<176x128xf32>
    %c0_17 = arith.constant 0 : index
    %c0_18 = arith.constant 0 : index
    %19 = vector.load %arg8[%c0_17, %c0_18] : memref<128x128xf32, #tpu.memory_space<vmem>>, vector<128x128xf32>
    %cst_19 = arith.constant dense<0.000000e+00> : vector<176x128xf32>
    %20 = tpu.matmul %18, %19, %cst_19 {dimension_numbers = #tpu.dot_dimension_numbers<[1], [0], [0], [1], [0, 0, 1, 1], [], []>} : vector<176x128xf32>, vector<128x128xf32>, vector<176x128xf32> -> vector<176x128xf32>
    %c0_20 = arith.constant 0 : index
    %c0_21 = arith.constant 0 : index
    %21 = vector.load %arg9[%c0_20, %c0_21] : memref<1x128xf32, #tpu.memory_space<vmem>>, vector<1x128xf32>
    %22 = vector.broadcast %21 : vector<1x128xf32> to vector<176x128xf32>
    %23 = arith.addf %20, %22 : vector<176x128xf32>
    %c0_22 = arith.constant 0 : index
    %c0_23 = arith.constant 0 : index
    %24 = vector.load %arg10[%c0_22, %c0_23] : memref<176x128xf32, #tpu.memory_space<vmem>>, vector<176x128xf32>
    tpu.vector_store %arg10[%c0_22, %c0_23], %23 {strides = array<i32>} : memref<176x128xf32, #tpu.memory_space<vmem>>, vector<176x128xf32>,
    return
  }
  func.func @transform_0(%arg0: i32) -> (i32, i32) {
    %c0_i32 = arith.constant 0 : i32
    %c0_i32_0 = arith.constant 0 : i32
    return %arg0, %c0_i32 : i32, i32
  }
  func.func @transform_1(%arg0: i32) -> (i32, i32) {
    %c0_i32 = arith.constant 0 : i32
    %c0_i32_0 = arith.constant 0 : i32
    return %arg0, %c0_i32 : i32, i32
  }
  func.func @transform_2(%arg0: i32) -> (i32, i32) {
    %c0_i32 = arith.constant 0 : i32
    %c0_i32_0 = arith.constant 0 : i32
    %c0_i32_1 = arith.constant 0 : i32
    return %c0_i32, %c0_i32_0 : i32, i32
  }
  func.func @transform_3(%arg0: i32) -> (i32, i32) {
    %c0_i32 = arith.constant 0 : i32
    %c0_i32_0 = arith.constant 0 : i32
    %c0_i32_1 = arith.constant 0 : i32
    return %c0_i32, %c0_i32_0 : i32, i32
  }
  func.func @transform_4(%arg0: i32) -> (i32, i32) {
    %c0_i32 = arith.constant 0 : i32
    %c0_i32_0 = arith.constant 0 : i32
    %c0_i32_1 = arith.constant 0 : i32
    return %c0_i32, %c0_i32_0 : i32, i32
  }
  func.func @transform_5(%arg0: i32) -> (i32, i32) {
    %c0_i32 = arith.constant 0 : i32
    %c0_i32_0 = arith.constant 0 : i32
    %c0_i32_1 = arith.constant 0 : i32
    return %c0_i32, %c0_i32_0 : i32, i32
  }
  func.func @transform_6(%arg0: i32) -> (i32, i32) {
    %c0_i32 = arith.constant 0 : i32
    %c0_i32_0 = arith.constant 0 : i32
    %c0_i32_1 = arith.constant 0 : i32
    return %c0_i32, %c0_i32_0 : i32, i32
  }
  func.func @transform_7(%arg0: i32) -> (i32, i32) {
    %c0_i32 = arith.constant 0 : i32
    %c0_i32_0 = arith.constant 0 : i32
    %c0_i32_1 = arith.constant 0 : i32
    return %c0_i32, %c0_i32_0 : i32, i32
  }
  func.func @transform_8(%arg0: i32) -> (i32, i32) {
    %c0_i32 = arith.constant 0 : i32
    %c0_i32_0 = arith.constant 0 : i32
    %c0_i32_1 = arith.constant 0 : i32
    return %c0_i32, %c0_i32_0 : i32, i32
  }
  func.func @transform_9(%arg0: i32) -> (i32, i32) {
    %c0_i32 = arith.constant 0 : i32
    %c0_i32_0 = arith.constant 0 : i32
    return %arg0, %c0_i32 : i32, i32
  }
}

</mosaic_0001>

<llo_original>
// kernel: tpu_custom_call.1
$region0: #{tpu_custom_call.1}
  #allocation0 [shape = 'u32[]', space=smem, size = 0x4, offset = 0x4, fixed_abs, tag = 'smem constant byte address 0x4 - core index']
  #allocation1 [shape = 'u32[144,128]{1,0:T(1,128)}', space=vmem, size = 0x12000, scoped, tag = 'internal scratch']
  %s0 = inlined_call_operand.vmem [shape: f32[176,8], index: 0, kind: input, shape index: {}]
  %s1 = inlined_call_operand.vmem [shape: f32[176,8], index: 1, kind: input, shape index: {}]
  %s2 = inlined_call_operand.vmem [shape: f32[8,128], index: 2, kind: input, shape index: {}]
  %s3 = inlined_call_operand.vmem [shape: f32[8,128], index: 3, kind: input, shape index: {}]
  %s4 = inlined_call_operand.vmem [shape: f32[1,128], index: 4, kind: input, shape index: {}]
  %s5 = inlined_call_operand.vmem [shape: f32[128,128], index: 5, kind: input, shape index: {}]
  %s6 = inlined_call_operand.vmem [shape: f32[1,128], index: 6, kind: input, shape index: {}]
  %s7 = inlined_call_operand.vmem [shape: f32[128,128], index: 7, kind: input, shape index: {}]
  %s8 = inlined_call_operand.vmem [shape: f32[1,128], index: 8, kind: input, shape index: {}]
  %s9 = inlined_call_operand.hbm [shape: f32[176,128], index: 9, kind: output, shape index: {}]
  %s10 = sld [smem:[#allocation0]]
  $region46: #{tpu_custom_call.1} parent=0
    _
  %s12 = ssub.s32 1, %s10
  %s13 = scalar_select 0, %s12, %s10
  $region1: #{tpu_custom_call.1} parent=0
    #allocation2 [shape = 'u8[90112]{0}', space=vmem, size = 0x16000, scoped, tag = 'output window, operand 0, single buffered']
    #allocation3 [shape = 's32[1]{0}', space=sflag, size = 0x4, scoped, tag = 'scoped memory for tpu_custom_call.1']
    %14 = vsyncpa [#allocation3], 0
    // Predicated region
    $region2: #{tpu_custom_call.1} parent=1 // pred_check
      _
    $region3: #{tpu_custom_call.1} parent=1 // pred_check_branch
      %16 = sbr.rel (0) target = $region5
    $region4: #{tpu_custom_call.1} parent=1 // pred_region
      _
    $region5: #{tpu_custom_call.1} parent=1 // pred_fallthru
      _
    // Predicated region
    $region6: #{tpu_custom_call.1} parent=1 // pred_check
      _
    $region7: #{tpu_custom_call.1} parent=1 // pred_check_branch
      %18 = sbr.rel (0) target = $region9
    $region8: #{tpu_custom_call.1} parent=1 // pred_region
      _
    $region9: #{tpu_custom_call.1} parent=1 // pred_fallthru
      _
    // Predicated region
    $region10: #{tpu_custom_call.1} parent=1 // pred_check
      _
    $region11: #{tpu_custom_call.1} parent=1 // pred_check_branch
      %20 = sbr.rel (0) target = $region13
    $region12: #{tpu_custom_call.1} parent=1 // pred_region
      _
    $region13: #{tpu_custom_call.1} parent=1 // pred_fallthru
      _
    // Predicated region
    $region14: #{tpu_custom_call.1} parent=1 // pred_check
      _
    $region15: #{tpu_custom_call.1} parent=1 // pred_check_branch
      %22 = sbr.rel (0) target = $region17
    $region16: #{tpu_custom_call.1} parent=1 // pred_region
      _
    $region17: #{tpu_custom_call.1} parent=1 // pred_fallthru
      _
    // Predicated region
    $region18: #{tpu_custom_call.1} parent=1 // pred_check
      _
    $region19: #{tpu_custom_call.1} parent=1 // pred_check_branch
      %24 = sbr.rel (0) target = $region21
    $region20: #{tpu_custom_call.1} parent=1 // pred_region
      _
    $region21: #{tpu_custom_call.1} parent=1 // pred_fallthru
      _
    // Predicated region
    $region22: #{tpu_custom_call.1} parent=1 // pred_check
      _
    $region23: #{tpu_custom_call.1} parent=1 // pred_check_branch
      %26 = sbr.rel (0) target = $region25
    $region24: #{tpu_custom_call.1} parent=1 // pred_region
      _
    $region25: #{tpu_custom_call.1} parent=1 // pred_fallthru
      _
    // Predicated region
    $region26: #{tpu_custom_call.1} parent=1 // pred_check
      _
    $region27: #{tpu_custom_call.1} parent=1 // pred_check_branch
      %28 = sbr.rel (0) target = $region29
    $region28: #{tpu_custom_call.1} parent=1 // pred_region
      _
    $region29: #{tpu_custom_call.1} parent=1 // pred_fallthru
      _
    // Predicated region
    $region30: #{tpu_custom_call.1} parent=1 // pred_check
      _
    $region31: #{tpu_custom_call.1} parent=1 // pred_check_branch
      %30 = sbr.rel (0) target = $region33
    $region32: #{tpu_custom_call.1} parent=1 // pred_region
      _
    $region33: #{tpu_custom_call.1} parent=1 // pred_fallthru
      _
    // Predicated region
    $region34: #{tpu_custom_call.1} parent=1 // pred_check
      _
    $region35: #{tpu_custom_call.1} parent=1 // pred_check_branch
      %32 = sbr.rel (0) target = $region37
    $region36: #{tpu_custom_call.1} parent=1 // pred_region
      _
    $region37: #{tpu_custom_call.1} parent=1 // pred_fallthru
      _
    %v33 = vld [vmem:[%s0] sm:$0xff]
    %v34 = vld [vmem:[%s0 + $0x8] sm:$0xff]
    %v35 = vld [vmem:[%s0 + $0x10] sm:$0xff]
    %v36 = vld [vmem:[%s0 + $0x18] sm:$0xff]
    %v37 = vld [vmem:[%s0 + $0x20] sm:$0xff]
    %v38 = vld [vmem:[%s0 + $0x28] sm:$0xff]
    %v39 = vld [vmem:[%s0 + $0x30] sm:$0xff]
    %v40 = vld [vmem:[%s0 + $0x38] sm:$0xff]
    %v41 = vld [vmem:[%s0 + $0x40] sm:$0xff]
    %v42 = vld [vmem:[%s0 + $0x48] sm:$0xff]
    %v43 = vld [vmem:[%s0 + $0x50] sm:$0xff]
    %v44 = vld [vmem:[%s0 + $0x58] sm:$0xff]
    %v45 = vld [vmem:[%s0 + $0x60] sm:$0xff]
    %v46 = vld [vmem:[%s0 + $0x68] sm:$0xff]
    %v47 = vld [vmem:[%s0 + $0x70] sm:$0xff]
    %v48 = vld [vmem:[%s0 + $0x78] sm:$0xff]
    %v49 = vld [vmem:[%s0 + $0x80] sm:$0xff]
    %v50 = vld [vmem:[%s0 + $0x88] sm:$0xff]
    %v51 = vld [vmem:[%s0 + $0x90] sm:$0xff]
    %v52 = vld [vmem:[%s0 + $0x98] sm:$0xff]
    %v53 = vld [vmem:[%s0 + $0xa0] sm:$0xff]
    %v54 = vld [vmem:[%s0 + $0xa8] sm:$0xff]
    %v55 = vld [vmem:[%s2] sm:$0xff]
    %v56 = vld [vmem:[%s1] sm:$0xff]
    %v57 = vld [vmem:[%s1 + $0x8] sm:$0xff]
    %v58 = vld [vmem:[%s1 + $0x10] sm:$0xff]
    %v59 = vld [vmem:[%s1 + $0x18] sm:$0xff]
    %v60 = vld [vmem:[%s1 + $0x20] sm:$0xff]
    %v61 = vld [vmem:[%s1 + $0x28] sm:$0xff]
    %v62 = vld [vmem:[%s1 + $0x30] sm:$0xff]
    %v63 = vld [vmem:[%s1 + $0x38] sm:$0xff]
    %v64 = vld [vmem:[%s1 + $0x40] sm:$0xff]
    %v65 = vld [vmem:[%s1 + $0x48] sm:$0xff]
    %v66 = vld [vmem:[%s1 + $0x50] sm:$0xff]
    %v67 = vld [vmem:[%s1 + $0x58] sm:$0xff]
    %v68 = vld [vmem:[%s1 + $0x60] sm:$0xff]
    %v69 = vld [vmem:[%s1 + $0x68] sm:$0xff]
    %v70 = vld [vmem:[%s1 + $0x70] sm:$0xff]
    %v71 = vld [vmem:[%s1 + $0x78] sm:$0xff]
    %v72 = vld [vmem:[%s1 + $0x80] sm:$0xff]
    %v73 = vld [vmem:[%s1 + $0x88] sm:$0xff]
    %v74 = vld [vmem:[%s1 + $0x90] sm:$0xff]
    %v75 = vld [vmem:[%s1 + $0x98] sm:$0xff]
    %v76 = vld [vmem:[%s1 + $0xa0] sm:$0xff]
    %v77 = vld [vmem:[%s1 + $0xa8] sm:$0xff]
    %v78 = vld [vmem:[%s3] sm:$0xff]
    %vm79 = vcmask 64512
    %v81 = vsel %vm79, %v56, 0
    %v84 = vsel %vm79, %v57, 0
    %v87 = vsel %vm79, %v58, 0
    %v90 = vsel %vm79, %v59, 0
    %v93 = vsel %vm79, %v60, 0
    %v96 = vsel %vm79, %v61, 0
    %v99 = vsel %vm79, %v62, 0
    %v102 = vsel %vm79, %v63, 0
    %v105 = vsel %vm79, %v64, 0
    %v108 = vsel %vm79, %v65, 0
    %v111 = vsel %vm79, %v66, 0
    %v114 = vsel %vm79, %v67, 0
    %v117 = vsel %vm79, %v68, 0
    %v120 = vsel %vm79, %v69, 0
    %v123 = vsel %vm79, %v70, 0
    %v126 = vsel %vm79, %v71, 0
    %v129 = vsel %vm79, %v72, 0
    %v132 = vsel %vm79, %v73, 0
    %v135 = vsel %vm79, %v74, 0
    %v138 = vsel %vm79, %v75, 0
    %v141 = vsel %vm79, %v76, 0
    %v144 = vsel %vm79, %v77, 0
    %146 = vmatprep.subr.mxu0 0.0
    %147 = vmatpush1.msra.mxu0 0.0
    %148 = vmatprep.subr.mxu0 0.0
    %149 = vmatpush1.msra.mxu0 0.0
    %150 = vmatprep.subr.mxu0 0.0
    %151 = vmatpush1.msra.mxu0 0.0
    %152 = vmatprep.subr.mxu0 0.0
    %153 = vmatpush1.msra.mxu0 0.0
    %154 = vmatprep.subr.mxu0 0.0
    %155 = vmatpush1.msra.mxu0 0.0
    %156 = vmatprep.subr.mxu0 0.0
    %157 = vmatpush1.msra.mxu0 0.0
    %158 = vmatprep.subr.mxu0 0.0
    %159 = vmatpush1.msra.mxu0 0.0
    %160 = vmatprep.subr.mxu0 0.0
    %161 = vmatpush1.msra.mxu0 0.0
    %162 = vmatprep.subr.mxu0 0.0
    %163 = vmatpush1.msra.mxu0 0.0
    %164 = vmatprep.subr.mxu0 0.0
    %165 = vmatpush1.msra.mxu0 0.0
    %166 = vmatprep.subr.mxu0 0.0
    %167 = vmatpush1.msra.mxu0 0.0
    %168 = vmatprep.subr.mxu0 0.0
    %169 = vmatpush1.msra.mxu0 0.0
    %170 = vmatprep.subr.mxu0 0.0
    %171 = vmatpush1.msra.mxu0 0.0
    %172 = vmatprep.subr.mxu0 0.0
    %173 = vmatpush1.msra.mxu0 0.0
    %174 = vmatprep.subr.mxu0 0.0
    %175 = vmatpush1.msra.mxu0 0.0
    %176 = vmatprep.subr.mxu0 0.0
    %177 = vmatpush1.msra.mxu0 %v78
    %178 = vmatprep.subr.mxu0 0.0
    %179 = vmatpush2.msra.mxu0 0.0
    %180 = vmatprep.subr.mxu0 0.0
    %181 = vmatpush2.msra.mxu0 0.0
    %182 = vmatprep.subr.mxu0 0.0
    %183 = vmatpush2.msra.mxu0 0.0
    %184 = vmatprep.subr.mxu0 0.0
    %185 = vmatpush2.msra.mxu0 0.0
    %186 = vmatprep.subr.mxu0 0.0
    %187 = vmatpush2.msra.mxu0 0.0
    %188 = vmatprep.subr.mxu0 0.0
    %189 = vmatpush2.msra.mxu0 0.0
    %190 = vmatprep.subr.mxu0 0.0
    %191 = vmatpush2.msra.mxu0 0.0
    %192 = vmatprep.subr.mxu0 0.0
    %193 = vmatpush2.msra.mxu0 0.0
    %194 = vmatprep.subr.mxu0 0.0
    %195 = vmatpush2.msra.mxu0 0.0
    %196 = vmatprep.subr.mxu0 0.0
    %197 = vmatpush2.msra.mxu0 0.0
    %198 = vmatprep.subr.mxu0 0.0
    %199 = vmatpush2.msra.mxu0 0.0
    %200 = vmatprep.subr.mxu0 0.0
    %201 = vmatpush2.msra.mxu0 0.0
    %202 = vmatprep.subr.mxu0 0.0
    %203 = vmatpush2.msra.mxu0 0.0
    %204 = vmatprep.subr.mxu0 0.0
    %205 = vmatpush2.msra.mxu0 0.0
    %206 = vmatprep.subr.mxu0 0.0
    %207 = vmatpush2.msra.mxu0 0.0
    %208 = vmatprep.subr.mxu0 0.0
    %209 = vmatpush2.msra.mxu0 0.0
    %210 = vmatprep.mubr.f32.mxu0 0.0
    %211 = vmatmul.mubr.f32.gmra.mxu0 %v81
    %v212 = vpop.f32.mrf.mxu0
    %v213 = vadd.f32 0.0, %v212
    %v214 = vpop.f32.mrf.mxu0
    %215 = vmatprep.mubr.f32.mxu0 0.0
    %216 = vmatmul.mubr.f32.gmra.mxu0 %v84
    %v217 = vpop.f32.mrf.mxu0
    %v218 = vadd.f32 0.0, %v217
    %v219 = vpop.f32.mrf.mxu0
    %220 = vmatprep.mubr.f32.mxu0 0.0
    %221 = vmatmul.mubr.f32.gmra.mxu0 %v87
    %v222 = vpop.f32.mrf.mxu0
    %v223 = vadd.f32 0.0, %v222
    %v224 = vpop.f32.mrf.mxu0
    %225 = vmatprep.mubr.f32.mxu0 0.0
    %226 = vmatmul.mubr.f32.gmra.mxu0 %v90
    %v227 = vpop.f32.mrf.mxu0
    %v228 = vadd.f32 0.0, %v227
    %v229 = vpop.f32.mrf.mxu0
    %230 = vmatprep.mubr.f32.mxu0 0.0
    %231 = vmatmul.mubr.f32.gmra.mxu0 %v93
    %v232 = vpop.f32.mrf.mxu0
    %v233 = vadd.f32 0.0, %v232
    %v234 = vpop.f32.mrf.mxu0
    %235 = vmatprep.mubr.f32.mxu0 0.0
    %236 = vmatmul.mubr.f32.gmra.mxu0 %v96
    %v237 = vpop.f32.mrf.mxu0
    %v238 = vadd.f32 0.0, %v237
    %v239 = vpop.f32.mrf.mxu0
    %240 = vmatprep.mubr.f32.mxu0 0.0
    %241 = vmatmul.mubr.f32.gmra.mxu0 %v99
    %v242 = vpop.f32.mrf.mxu0
    %v243 = vadd.f32 0.0, %v242
    %v244 = vpop.f32.mrf.mxu0
    %245 = vmatprep.mubr.f32.mxu0 0.0
    %246 = vmatmul.mubr.f32.gmra.mxu0 %v102
    %v247 = vpop.f32.mrf.mxu0
    %v248 = vadd.f32 0.0, %v247
    %v249 = vpop.f32.mrf.mxu0
    %250 = vmatprep.mubr.f32.mxu0 0.0
    %251 = vmatmul.mubr.f32.gmra.mxu0 %v105
    %v252 = vpop.f32.mrf.mxu0
    %v253 = vadd.f32 0.0, %v252
    %v254 = vpop.f32.mrf.mxu0
    %255 = vmatprep.mubr.f32.mxu0 0.0
    %256 = vmatmul.mubr.f32.gmra.mxu0 %v108
    %v257 = vpop.f32.mrf.mxu0
    %v258 = vadd.f32 0.0, %v257
    %v259 = vpop.f32.mrf.mxu0
    %260 = vmatprep.mubr.f32.mxu0 0.0
    %261 = vmatmul.mubr.f32.gmra.mxu0 %v111
    %v262 = vpop.f32.mrf.mxu0
    %v263 = vadd.f32 0.0, %v262
    %v264 = vpop.f32.mrf.mxu0
    %265 = vmatprep.mubr.f32.mxu0 0.0
    %266 = vmatmul.mubr.f32.gmra.mxu0 %v114
    %v267 = vpop.f32.mrf.mxu0
    %v268 = vadd.f32 0.0, %v267
    %v269 = vpop.f32.mrf.mxu0
    %270 = vmatprep.mubr.f32.mxu0 0.0
    %271 = vmatmul.mubr.f32.gmra.mxu0 %v117
    %v272 = vpop.f32.mrf.mxu0
    %v273 = vadd.f32 0.0, %v272
    %v274 = vpop.f32.mrf.mxu0
    %275 = vmatprep.mubr.f32.mxu0 0.0
    %276 = vmatmul.mubr.f32.gmra.mxu0 %v120
    %v277 = vpop.f32.mrf.mxu0
    %v278 = vadd.f32 0.0, %v277
    %v279 = vpop.f32.mrf.mxu0
    %280 = vmatprep.mubr.f32.mxu0 0.0
    %281 = vmatmul.mubr.f32.gmra.mxu0 %v123
    %v282 = vpop.f32.mrf.mxu0
    %v283 = vadd.f32 0.0, %v282
    %v284 = vpop.f32.mrf.mxu0
    %285 = vmatprep.mubr.f32.mxu0 0.0
    %286 = vmatmul.mubr.f32.gmra.mxu0 %v126
    %v287 = vpop.f32.mrf.mxu0
    %v288 = vadd.f32 0.0, %v287
    %v289 = vpop.f32.mrf.mxu0
    %290 = vmatprep.mubr.f32.mxu0 0.0
    %291 = vmatmul.mubr.f32.gmra.mxu0 %v129
    %v292 = vpop.f32.mrf.mxu0
    %v293 = vadd.f32 0.0, %v292
    %v294 = vpop.f32.mrf.mxu0
    %295 = vmatprep.mubr.f32.mxu0 0.0
    %296 = vmatmul.mubr.f32.gmra.mxu0 %v132
    %v297 = vpop.f32.mrf.mxu0
    %v298 = vadd.f32 0.0, %v297
    %v299 = vpop.f32.mrf.mxu0
    %300 = vmatprep.mubr.f32.mxu0 0.0
    %301 = vmatmul.mubr.f32.gmra.mxu0 %v135
    %v302 = vpop.f32.mrf.mxu0
    %v303 = vadd.f32 0.0, %v302
    %v304 = vpop.f32.mrf.mxu0
    %305 = vmatprep.mubr.f32.mxu0 0.0
    %306 = vmatmul.mubr.f32.gmra.mxu0 %v138
    %v307 = vpop.f32.mrf.mxu0
    %v308 = vadd.f32 0.0, %v307
    %v309 = vpop.f32.mrf.mxu0
    %310 = vmatprep.mubr.f32.mxu0 0.0
    %311 = vmatmul.mubr.f32.gmra.mxu0 %v141
    %v312 = vpop.f32.mrf.mxu0
    %v313 = vadd.f32 0.0, %v312
    %v314 = vpop.f32.mrf.mxu0
    %315 = vmatprep.mubr.f32.mxu0 0.0
    %316 = vmatmul.mubr.f32.gmra.mxu0 %v144
    %v317 = vpop.f32.mrf.mxu0
    %v318 = vadd.f32 0.0, %v317
    %v319 = vpop.f32.mrf.mxu0
    %320 = vdwg.mxu0
    %v322 = vsel %vm79, %v33, 0
    %v325 = vsel %vm79, %v34, 0
    %v328 = vsel %vm79, %v35, 0
    %v331 = vsel %vm79, %v36, 0
    %v334 = vsel %vm79, %v37, 0
    %v337 = vsel %vm79, %v38, 0
    %v340 = vsel %vm79, %v39, 0
    %v343 = vsel %vm79, %v40, 0
    %v346 = vsel %vm79, %v41, 0
    %v349 = vsel %vm79, %v42, 0
    %v352 = vsel %vm79, %v43, 0
    %v355 = vsel %vm79, %v44, 0
    %v358 = vsel %vm79, %v45, 0
    %v361 = vsel %vm79, %v46, 0
    %v364 = vsel %vm79, %v47, 0
    %v367 = vsel %vm79, %v48, 0
    %v370 = vsel %vm79, %v49, 0
    %v373 = vsel %vm79, %v50, 0
    %v376 = vsel %vm79, %v51, 0
    %v379 = vsel %vm79, %v52, 0
    %v382 = vsel %vm79, %v53, 0
    %v385 = vsel %vm79, %v54, 0
    %387 = vmatprep.subr.mxu0 0.0
    %388 = vmatpush1.msra.mxu0 0.0
    %389 = vmatprep.subr.mxu0 0.0
    %390 = vmatpush1.msra.mxu0 0.0
    %391 = vmatprep.subr.mxu0 0.0
    %392 = vmatpush1.msra.mxu0 0.0
    %393 = vmatprep.subr.mxu0 0.0
    %394 = vmatpush1.msra.mxu0 0.0
    %395 = vmatprep.subr.mxu0 0.0
    %396 = vmatpush1.msra.mxu0 0.0
    %397 = vmatprep.subr.mxu0 0.0
    %398 = vmatpush1.msra.mxu0 0.0
    %399 = vmatprep.subr.mxu0 0.0
    %400 = vmatpush1.msra.mxu0 0.0
    %401 = vmatprep.subr.mxu0 0.0
    %402 = vmatpush1.msra.mxu0 0.0
    %403 = vmatprep.subr.mxu0 0.0
    %404 = vmatpush1.msra.mxu0 0.0
    %405 = vmatprep.subr.mxu0 0.0
    %406 = vmatpush1.msra.mxu0 0.0
    %407 = vmatprep.subr.mxu0 0.0
    %408 = vmatpush1.msra.mxu0 0.0
    %409 = vmatprep.subr.mxu0 0.0
    %410 = vmatpush1.msra.mxu0 0.0
    %411 = vmatprep.subr.mxu0 0.0
    %412 = vmatpush1.msra.mxu0 0.0
    %413 = vmatprep.subr.mxu0 0.0
    %414 = vmatpush1.msra.mxu0 0.0
    %415 = vmatprep.subr.mxu0 0.0
    %416 = vmatpush1.msra.mxu0 0.0
    %417 = vmatprep.subr.mxu0 0.0
    %418 = vmatpush1.msra.mxu0 %v55
    %419 = vmatprep.subr.mxu0 0.0
    %420 = vmatpush2.msra.mxu0 0.0
    %421 = vmatprep.subr.mxu0 0.0
    %422 = vmatpush2.msra.mxu0 0.0
    %423 = vmatprep.subr.mxu0 0.0
    %424 = vmatpush2.msra.mxu0 0.0
    %425 = vmatprep.subr.mxu0 0.0
    %426 = vmatpush2.msra.mxu0 0.0
    %427 = vmatprep.subr.mxu0 0.0
    %428 = vmatpush2.msra.mxu0 0.0
    %429 = vmatprep.subr.mxu0 0.0
    %430 = vmatpush2.msra.mxu0 0.0
    %431 = vmatprep.subr.mxu0 0.0
    %432 = vmatpush2.msra.mxu0 0.0
    %433 = vmatprep.subr.mxu0 0.0
    %434 = vmatpush2.msra.mxu0 0.0
    %435 = vmatprep.subr.mxu0 0.0
    %436 = vmatpush2.msra.mxu0 0.0
    %437 = vmatprep.subr.mxu0 0.0
    %438 = vmatpush2.msra.mxu0 0.0
    %439 = vmatprep.subr.mxu0 0.0
    %440 = vmatpush2.msra.mxu0 0.0
    %441 = vmatprep.subr.mxu0 0.0
    %442 = vmatpush2.msra.mxu0 0.0
    %443 = vmatprep.subr.mxu0 0.0
    %444 = vmatpush2.msra.mxu0 0.0
    %445 = vmatprep.subr.mxu0 0.0
    %446 = vmatpush2.msra.mxu0 0.0
    %447 = vmatprep.subr.mxu0 0.0
    %448 = vmatpush2.msra.mxu0 0.0
    %449 = vmatprep.subr.mxu0 0.0
    %450 = vmatpush2.msra.mxu0 0.0
    %451 = vmatprep.mubr.f32.mxu0 0.0
    %452 = vmatmul.mubr.f32.gmra.mxu0 %v322
    %v453 = vpop.f32.mrf.mxu0
    %v454 = vadd.f32 %v213, %v453
    %v455 = vpop.f32.mrf.mxu0
    %456 = vmatprep.mubr.f32.mxu0 0.0
    %457 = vmatmul.mubr.f32.gmra.mxu0 %v325
    %v458 = vpop.f32.mrf.mxu0
    %v459 = vadd.f32 %v218, %v458
    %v460 = vpop.f32.mrf.mxu0
    %461 = vmatprep.mubr.f32.mxu0 0.0
    %462 = vmatmul.mubr.f32.gmra.mxu0 %v328
    %v463 = vpop.f32.mrf.mxu0
    %v464 = vadd.f32 %v223, %v463
    %v465 = vpop.f32.mrf.mxu0
    %466 = vmatprep.mubr.f32.mxu0 0.0
    %467 = vmatmul.mubr.f32.gmra.mxu0 %v331
    %v468 = vpop.f32.mrf.mxu0
    %v469 = vadd.f32 %v228, %v468
    %v470 = vpop.f32.mrf.mxu0
    %471 = vmatprep.mubr.f32.mxu0 0.0
    %472 = vmatmul.mubr.f32.gmra.mxu0 %v334
    %v473 = vpop.f32.mrf.mxu0
    %v474 = vadd.f32 %v233, %v473
    %v475 = vpop.f32.mrf.mxu0
    %476 = vmatprep.mubr.f32.mxu0 0.0
    %477 = vmatmul.mubr.f32.gmra.mxu0 %v337
    %v478 = vpop.f32.mrf.mxu0
    %v479 = vadd.f32 %v238, %v478
    %v480 = vpop.f32.mrf.mxu0
    %481 = vmatprep.mubr.f32.mxu0 0.0
    %482 = vmatmul.mubr.f32.gmra.mxu0 %v340
    %v483 = vpop.f32.mrf.mxu0
    %v484 = vadd.f32 %v243, %v483
    %v485 = vpop.f32.mrf.mxu0
    %486 = vmatprep.mubr.f32.mxu0 0.0
    %487 = vmatmul.mubr.f32.gmra.mxu0 %v343
    %v488 = vpop.f32.mrf.mxu0
    %v489 = vadd.f32 %v248, %v488
    %v490 = vpop.f32.mrf.mxu0
    %491 = vmatprep.mubr.f32.mxu0 0.0
    %492 = vmatmul.mubr.f32.gmra.mxu0 %v346
    %v493 = vpop.f32.mrf.mxu0
    %v494 = vadd.f32 %v253, %v493
    %v495 = vpop.f32.mrf.mxu0
    %496 = vmatprep.mubr.f32.mxu0 0.0
    %497 = vmatmul.mubr.f32.gmra.mxu0 %v349
    %v498 = vpop.f32.mrf.mxu0
    %v499 = vadd.f32 %v258, %v498
    %v500 = vpop.f32.mrf.mxu0
    %501 = vmatprep.mubr.f32.mxu0 0.0
    %502 = vmatmul.mubr.f32.gmra.mxu0 %v352
    %v503 = vpop.f32.mrf.mxu0
    %v504 = vadd.f32 %v263, %v503
    %v505 = vpop.f32.mrf.mxu0
    %506 = vmatprep.mubr.f32.mxu0 0.0
    %507 = vmatmul.mubr.f32.gmra.mxu0 %v355
    %v508 = vpop.f32.mrf.mxu0
    %v509 = vadd.f32 %v268, %v508
    %v510 = vpop.f32.mrf.mxu0
    %511 = vmatprep.mubr.f32.mxu0 0.0
    %512 = vmatmul.mubr.f32.gmra.mxu0 %v358
    %v513 = vpop.f32.mrf.mxu0
    %v514 = vadd.f32 %v273, %v513
    %v515 = vpop.f32.mrf.mxu0
    %516 = vmatprep.mubr.f32.mxu0 0.0
    %517 = vmatmul.mubr.f32.gmra.mxu0 %v361
    %v518 = vpop.f32.mrf.mxu0
    %v519 = vadd.f32 %v278, %v518
    %v520 = vpop.f32.mrf.mxu0
    %521 = vmatprep.mubr.f32.mxu0 0.0
    %522 = vmatmul.mubr.f32.gmra.mxu0 %v364
    %v523 = vpop.f32.mrf.mxu0
    %v524 = vadd.f32 %v283, %v523
    %v525 = vpop.f32.mrf.mxu0
    %526 = vmatprep.mubr.f32.mxu0 0.0
    %527 = vmatmul.mubr.f32.gmra.mxu0 %v367
    %v528 = vpop.f32.mrf.mxu0
    %v529 = vadd.f32 %v288, %v528
    %v530 = vpop.f32.mrf.mxu0
    %531 = vmatprep.mubr.f32.mxu0 0.0
    %532 = vmatmul.mubr.f32.gmra.mxu0 %v370
    %v533 = vpop.f32.mrf.mxu0
    %v534 = vadd.f32 %v293, %v533
    %v535 = vpop.f32.mrf.mxu0
    %536 = vmatprep.mubr.f32.mxu0 0.0
    %537 = vmatmul.mubr.f32.gmra.mxu0 %v373
    %v538 = vpop.f32.mrf.mxu0
    %v539 = vadd.f32 %v298, %v538
    %v540 = vpop.f32.mrf.mxu0
    %541 = vmatprep.mubr.f32.mxu0 0.0
    %542 = vmatmul.mubr.f32.gmra.mxu0 %v376
    %v543 = vpop.f32.mrf.mxu0
    %v544 = vadd.f32 %v303, %v543
    %v545 = vpop.f32.mrf.mxu0
    %546 = vmatprep.mubr.f32.mxu0 0.0
    %547 = vmatmul.mubr.f32.gmra.mxu0 %v379
    %v548 = vpop.f32.mrf.mxu0
    %v549 = vadd.f32 %v308, %v548
    %v550 = vpop.f32.mrf.mxu0
    %551 = vmatprep.mubr.f32.mxu0 0.0
    %552 = vmatmul.mubr.f32.gmra.mxu0 %v382
    %v553 = vpop.f32.mrf.mxu0
    %v554 = vadd.f32 %v313, %v553
    %v555 = vpop.f32.mrf.mxu0
    %556 = vmatprep.mubr.f32.mxu0 0.0
    %557 = vmatmul.mubr.f32.gmra.mxu0 %v385
    %v558 = vpop.f32.mrf.mxu0
    %v559 = vadd.f32 %v318, %v558
    %v560 = vpop.f32.mrf.mxu0
    %561 = vdwg.mxu0
    %v562 = vld [vmem:[%s4] sm:$0x1]
    %v564 = vlaneseq
    %v565 = vshrl.u32 %v564, 7
    %v566 = vsub.s32 0, %v565
    %v567 = vrot.slane %v562, %v566
    %v569 = vadd.f32 %v454, %v567
    %v570 = vadd.f32 %v459, %v567
    %v571 = vadd.f32 %v464, %v567
    %v572 = vadd.f32 %v469, %v567
    %v573 = vadd.f32 %v474, %v567
    %v574 = vadd.f32 %v479, %v567
    %v575 = vadd.f32 %v484, %v567
    %v576 = vadd.f32 %v489, %v567
    %v577 = vadd.f32 %v494, %v567
    %v578 = vadd.f32 %v499, %v567
    %v579 = vadd.f32 %v504, %v567
    %v580 = vadd.f32 %v509, %v567
    %v581 = vadd.f32 %v514, %v567
    %v582 = vadd.f32 %v519, %v567
    %v583 = vadd.f32 %v524, %v567
    %v584 = vadd.f32 %v529, %v567
    %v585 = vadd.f32 %v534, %v567
    %v586 = vadd.f32 %v539, %v567
    %v587 = vadd.f32 %v544, %v567
    %v588 = vadd.f32 %v549, %v567
    %v589 = vadd.f32 %v554, %v567
    %v590 = vadd.f32 %v559, %v567
    %v591 = vmax.f32 %v569, 0.0
    %v592 = vmax.f32 %v570, 0.0
    %v593 = vmax.f32 %v571, 0.0
    %v594 = vmax.f32 %v572, 0.0
    %v595 = vmax.f32 %v573, 0.0
    %v596 = vmax.f32 %v574, 0.0
    %v597 = vmax.f32 %v575, 0.0
    %v598 = vmax.f32 %v576, 0.0
    %v599 = vmax.f32 %v577, 0.0
    %v600 = vmax.f32 %v578, 0.0
    %v601 = vmax.f32 %v579, 0.0
    %v602 = vmax.f32 %v580, 0.0
    %v603 = vmax.f32 %v581, 0.0
    %v604 = vmax.f32 %v582, 0.0
    %v605 = vmax.f32 %v583, 0.0
    %v606 = vmax.f32 %v584, 0.0
    %v607 = vmax.f32 %v585, 0.0
    %v608 = vmax.f32 %v586, 0.0
    %v609 = vmax.f32 %v587, 0.0
    %v610 = vmax.f32 %v588, 0.0
    %v611 = vmax.f32 %v589, 0.0
    %v612 = vmax.f32 %v590, 0.0
    %v613 = vld [vmem:[%s5] sm:$0xff]
    %v614 = vld [vmem:[%s5 + $0x8] sm:$0xff]
    %v615 = vld [vmem:[%s5 + $0x10] sm:$0xff]
    %v616 = vld [vmem:[%s5 + $0x18] sm:$0xff]
    %v617 = vld [vmem:[%s5 + $0x20] sm:$0xff]
    %v618 = vld [vmem:[%s5 + $0x28] sm:$0xff]
    %v619 = vld [vmem:[%s5 + $0x30] sm:$0xff]
    %v620 = vld [vmem:[%s5 + $0x38] sm:$0xff]
    %v621 = vld [vmem:[%s5 + $0x40] sm:$0xff]
    %v622 = vld [vmem:[%s5 + $0x48] sm:$0xff]
    %v623 = vld [vmem:[%s5 + $0x50] sm:$0xff]
    %v624 = vld [vmem:[%s5 + $0x58] sm:$0xff]
    %v625 = vld [vmem:[%s5 + $0x60] sm:$0xff]
    %v626 = vld [vmem:[%s5 + $0x68] sm:$0xff]
    %v627 = vld [vmem:[%s5 + $0x70] sm:$0xff]
    %v628 = vld [vmem:[%s5 + $0x78] sm:$0xff]
    %v629 = vld [vmem:[%s6] sm:$0x1]
    %v631 = vlaneseq
    %v632 = vshrl.u32 %v631, 7
    %v633 = vsub.s32 0, %v632
    %v634 = vrot.slane %v629, %v633
    %636 = vmatprep.subr.mxu0 0.0
    %637 = vmatpush1.msra.mxu0 %v628
    %638 = vmatprep.subr.mxu0 0.0
    %639 = vmatpush1.msra.mxu0 %v627
    %640 = vmatprep.subr.mxu0 0.0
    %641 = vmatpush1.msra.mxu0 %v626
    %642 = vmatprep.subr.mxu0 0.0
    %643 = vmatpush1.msra.mxu0 %v625
    %644 = vmatprep.subr.mxu0 0.0
    %645 = vmatpush1.msra.mxu0 %v624
    %646 = vmatprep.subr.mxu0 0.0
    %647 = vmatpush1.msra.mxu0 %v623
    %648 = vmatprep.subr.mxu0 0.0
    %649 = vmatpush1.msra.mxu0 %v622
    %650 = vmatprep.subr.mxu0 0.0
    %651 = vmatpush1.msra.mxu0 %v621
    %652 = vmatprep.subr.mxu0 0.0
    %653 = vmatpush1.msra.mxu0 %v620
    %654 = vmatprep.subr.mxu0 0.0
    %655 = vmatpush1.msra.mxu0 %v619
    %656 = vmatprep.subr.mxu0 0.0
    %657 = vmatpush1.msra.mxu0 %v618
    %658 = vmatprep.subr.mxu0 0.0
    %659 = vmatpush1.msra.mxu0 %v617
    %660 = vmatprep.subr.mxu0 0.0
    %661 = vmatpush1.msra.mxu0 %v616
    %662 = vmatprep.subr.mxu0 0.0
    %663 = vmatpush1.msra.mxu0 %v615
    %664 = vmatprep.subr.mxu0 0.0
    %665 = vmatpush1.msra.mxu0 %v614
    %666 = vmatprep.subr.mxu0 0.0
    %667 = vmatpush1.msra.mxu0 %v613
    %668 = vmatprep.subr.mxu0 0.0
    %669 = vmatpush2.msra.mxu0 0.0
    %670 = vmatprep.subr.mxu0 0.0
    %671 = vmatpush2.msra.mxu0 0.0
    %672 = vmatprep.subr.mxu0 0.0
    %673 = vmatpush2.msra.mxu0 0.0
    %674 = vmatprep.subr.mxu0 0.0
    %675 = vmatpush2.msra.mxu0 0.0
    %676 = vmatprep.subr.mxu0 0.0
    %677 = vmatpush2.msra.mxu0 0.0
    %678 = vmatprep.subr.mxu0 0.0
    %679 = vmatpush2.msra.mxu0 0.0
    %680 = vmatprep.subr.mxu0 0.0
    %681 = vmatpush2.msra.mxu0 0.0
    %682 = vmatprep.subr.mxu0 0.0
    %683 = vmatpush2.msra.mxu0 0.0
    %684 = vmatprep.subr.mxu0 0.0
    %685 = vmatpush2.msra.mxu0 0.0
    %686 = vmatprep.subr.mxu0 0.0
    %687 = vmatpush2.msra.mxu0 0.0
    %688 = vmatprep.subr.mxu0 0.0
    %689 = vmatpush2.msra.mxu0 0.0
    %690 = vmatprep.subr.mxu0 0.0
    %691 = vmatpush2.msra.mxu0 0.0
    %692 = vmatprep.subr.mxu0 0.0
    %693 = vmatpush2.msra.mxu0 0.0
    %694 = vmatprep.subr.mxu0 0.0
    %695 = vmatpush2.msra.mxu0 0.0
    %696 = vmatprep.subr.mxu0 0.0
    %697 = vmatpush2.msra.mxu0 0.0
    %698 = vmatprep.subr.mxu0 0.0
    %699 = vmatpush2.msra.mxu0 0.0
    %700 = vmatprep.mubr.f32.mxu0 0.0
    %701 = vmatmul.mubr.f32.gmra.mxu0 %v591
    %v702 = vpop.f32.mrf.mxu0
    %v703 = vadd.f32 %v634, %v702
    %v704 = vpop.f32.mrf.mxu0
    %705 = vmatprep.mubr.f32.mxu0 0.0
    %706 = vmatmul.mubr.f32.gmra.mxu0 %v592
    %v707 = vpop.f32.mrf.mxu0
    %v708 = vadd.f32 %v634, %v707
    %v709 = vpop.f32.mrf.mxu0
    %710 = vmatprep.mubr.f32.mxu0 0.0
    %711 = vmatmul.mubr.f32.gmra.mxu0 %v593
    %v712 = vpop.f32.mrf.mxu0
    %v713 = vadd.f32 %v634, %v712
    %v714 = vpop.f32.mrf.mxu0
    %715 = vmatprep.mubr.f32.mxu0 0.0
    %716 = vmatmul.mubr.f32.gmra.mxu0 %v594
    %v717 = vpop.f32.mrf.mxu0
    %v718 = vadd.f32 %v634, %v717
    %v719 = vpop.f32.mrf.mxu0
    %720 = vmatprep.mubr.f32.mxu0 0.0
    %721 = vmatmul.mubr.f32.gmra.mxu0 %v595
    %v722 = vpop.f32.mrf.mxu0
    %v723 = vadd.f32 %v634, %v722
    %v724 = vpop.f32.mrf.mxu0
    %725 = vmatprep.mubr.f32.mxu0 0.0
    %726 = vmatmul.mubr.f32.gmra.mxu0 %v596
    %v727 = vpop.f32.mrf.mxu0
    %v728 = vadd.f32 %v634, %v727
    %v729 = vpop.f32.mrf.mxu0
    %730 = vmatprep.mubr.f32.mxu0 0.0
    %731 = vmatmul.mubr.f32.gmra.mxu0 %v597
    %v732 = vpop.f32.mrf.mxu0
    %v733 = vadd.f32 %v634, %v732
    %v734 = vpop.f32.mrf.mxu0
    %735 = vmatprep.mubr.f32.mxu0 0.0
    %736 = vmatmul.mubr.f32.gmra.mxu0 %v598
    %v737 = vpop.f32.mrf.mxu0
    %v738 = vadd.f32 %v634, %v737
    %v739 = vpop.f32.mrf.mxu0
    %740 = vmatprep.mubr.f32.mxu0 0.0
    %741 = vmatmul.mubr.f32.gmra.mxu0 %v599
    %v742 = vpop.f32.mrf.mxu0
    %v743 = vadd.f32 %v634, %v742
    %v744 = vpop.f32.mrf.mxu0
    %745 = vmatprep.mubr.f32.mxu0 0.0
    %746 = vmatmul.mubr.f32.gmra.mxu0 %v600
    %v747 = vpop.f32.mrf.mxu0
    %v748 = vadd.f32 %v634, %v747
    %v749 = vpop.f32.mrf.mxu0
    %750 = vmatprep.mubr.f32.mxu0 0.0
    %751 = vmatmul.mubr.f32.gmra.mxu0 %v601
    %v752 = vpop.f32.mrf.mxu0
    %v753 = vadd.f32 %v634, %v752
    %v754 = vpop.f32.mrf.mxu0
    %755 = vmatprep.mubr.f32.mxu0 0.0
    %756 = vmatmul.mubr.f32.gmra.mxu0 %v602
    %v757 = vpop.f32.mrf.mxu0
    %v758 = vadd.f32 %v634, %v757
    %v759 = vpop.f32.mrf.mxu0
    %760 = vmatprep.mubr.f32.mxu0 0.0
    %761 = vmatmul.mubr.f32.gmra.mxu0 %v603
    %v762 = vpop.f32.mrf.mxu0
    %v763 = vadd.f32 %v634, %v762
    %v764 = vpop.f32.mrf.mxu0
    %765 = vmatprep.mubr.f32.mxu0 0.0
    %766 = vmatmul.mubr.f32.gmra.mxu0 %v604
    %v767 = vpop.f32.mrf.mxu0
    %v768 = vadd.f32 %v634, %v767
    %v769 = vpop.f32.mrf.mxu0
    %770 = vmatprep.mubr.f32.mxu0 0.0
    %771 = vmatmul.mubr.f32.gmra.mxu0 %v605
    %v772 = vpop.f32.mrf.mxu0
    %v773 = vadd.f32 %v634, %v772
    %v774 = vpop.f32.mrf.mxu0
    %775 = vmatprep.mubr.f32.mxu0 0.0
    %776 = vmatmul.mubr.f32.gmra.mxu0 %v606
    %v777 = vpop.f32.mrf.mxu0
    %v778 = vadd.f32 %v634, %v777
    %v779 = vpop.f32.mrf.mxu0
    %780 = vmatprep.mubr.f32.mxu0 0.0
    %781 = vmatmul.mubr.f32.gmra.mxu0 %v607
    %v782 = vpop.f32.mrf.mxu0
    %v783 = vadd.f32 %v634, %v782
    %v784 = vpop.f32.mrf.mxu0
    %785 = vmatprep.mubr.f32.mxu0 0.0
    %786 = vmatmul.mubr.f32.gmra.mxu0 %v608
    %v787 = vpop.f32.mrf.mxu0
    %v788 = vadd.f32 %v634, %v787
    %v789 = vpop.f32.mrf.mxu0
    %790 = vmatprep.mubr.f32.mxu0 0.0
    %791 = vmatmul.mubr.f32.gmra.mxu0 %v609
    %v792 = vpop.f32.mrf.mxu0
    %v793 = vadd.f32 %v634, %v792
    %v794 = vpop.f32.mrf.mxu0
    %795 = vmatprep.mubr.f32.mxu0 0.0
    %796 = vmatmul.mubr.f32.gmra.mxu0 %v610
    %v797 = vpop.f32.mrf.mxu0
    %v798 = vadd.f32 %v634, %v797
    %v799 = vpop.f32.mrf.mxu0
    %800 = vmatprep.mubr.f32.mxu0 0.0
    %801 = vmatmul.mubr.f32.gmra.mxu0 %v611
    %v802 = vpop.f32.mrf.mxu0
    %v803 = vadd.f32 %v634, %v802
    %v804 = vpop.f32.mrf.mxu0
    %805 = vmatprep.mubr.f32.mxu0 0.0
    %806 = vmatmul.mubr.f32.gmra.mxu0 %v612
    %v807 = vpop.f32.mrf.mxu0
    %v808 = vadd.f32 %v634, %v807
    %v809 = vpop.f32.mrf.mxu0
    %810 = vdwg.mxu0
    %v811 = vmax.f32 %v703, 0.0
    %v812 = vmax.f32 %v708, 0.0
    %v813 = vmax.f32 %v713, 0.0
    %v814 = vmax.f32 %v718, 0.0
    %v815 = vmax.f32 %v723, 0.0
    %v816 = vmax.f32 %v728, 0.0
    %v817 = vmax.f32 %v733, 0.0
    %v818 = vmax.f32 %v738, 0.0
    %v819 = vmax.f32 %v743, 0.0
    %v820 = vmax.f32 %v748, 0.0
    %v821 = vmax.f32 %v753, 0.0
    %v822 = vmax.f32 %v758, 0.0
    %v823 = vmax.f32 %v763, 0.0
    %v824 = vmax.f32 %v768, 0.0
    %v825 = vmax.f32 %v773, 0.0
    %v826 = vmax.f32 %v778, 0.0
    %v827 = vmax.f32 %v783, 0.0
    %v828 = vmax.f32 %v788, 0.0
    %v829 = vmax.f32 %v793, 0.0
    %v830 = vmax.f32 %v798, 0.0
    %v831 = vmax.f32 %v803, 0.0
    %v832 = vmax.f32 %v808, 0.0
    %v833 = vld [vmem:[%s7] sm:$0xff]
    %v834 = vld [vmem:[%s7 + $0x8] sm:$0xff]
    %v835 = vld [vmem:[%s7 + $0x10] sm:$0xff]
    %v836 = vld [vmem:[%s7 + $0x18] sm:$0xff]
    %v837 = vld [vmem:[%s7 + $0x20] sm:$0xff]
    %v838 = vld [vmem:[%s7 + $0x28] sm:$0xff]
    %v839 = vld [vmem:[%s7 + $0x30] sm:$0xff]
    %v840 = vld [vmem:[%s7 + $0x38] sm:$0xff]
    %v841 = vld [vmem:[%s7 + $0x40] sm:$0xff]
    %v842 = vld [vmem:[%s7 + $0x48] sm:$0xff]
    %v843 = vld [vmem:[%s7 + $0x50] sm:$0xff]
    %v844 = vld [vmem:[%s7 + $0x58] sm:$0xff]
    %v845 = vld [vmem:[%s7 + $0x60] sm:$0xff]
    %v846 = vld [vmem:[%s7 + $0x68] sm:$0xff]
    %v847 = vld [vmem:[%s7 + $0x70] sm:$0xff]
    %v848 = vld [vmem:[%s7 + $0x78] sm:$0xff]
    %v849 = vld [vmem:[%s8] sm:$0x1]
    %v851 = vlaneseq
    %v852 = vshrl.u32 %v851, 7
    %v853 = vsub.s32 0, %v852
    %v854 = vrot.slane %v849, %v853
    %856 = vmatprep.subr.mxu0 0.0
    %857 = vmatpush1.msra.mxu0 %v848
    %858 = vmatprep.subr.mxu0 0.0
    %859 = vmatpush1.msra.mxu0 %v847
    %860 = vmatprep.subr.mxu0 0.0
    %861 = vmatpush1.msra.mxu0 %v846
    %862 = vmatprep.subr.mxu0 0.0
    %863 = vmatpush1.msra.mxu0 %v845
    %864 = vmatprep.subr.mxu0 0.0
    %865 = vmatpush1.msra.mxu0 %v844
    %866 = vmatprep.subr.mxu0 0.0
    %867 = vmatpush1.msra.mxu0 %v843
    %868 = vmatprep.subr.mxu0 0.0
    %869 = vmatpush1.msra.mxu0 %v842
    %870 = vmatprep.subr.mxu0 0.0
    %871 = vmatpush1.msra.mxu0 %v841
    %872 = vmatprep.subr.mxu0 0.0
    %873 = vmatpush1.msra.mxu0 %v840
    %874 = vmatprep.subr.mxu0 0.0
    %875 = vmatpush1.msra.mxu0 %v839
    %876 = vmatprep.subr.mxu0 0.0
    %877 = vmatpush1.msra.mxu0 %v838
    %878 = vmatprep.subr.mxu0 0.0
    %879 = vmatpush1.msra.mxu0 %v837
    %880 = vmatprep.subr.mxu0 0.0
    %881 = vmatpush1.msra.mxu0 %v836
    %882 = vmatprep.subr.mxu0 0.0
    %883 = vmatpush1.msra.mxu0 %v835
    %884 = vmatprep.subr.mxu0 0.0
    %885 = vmatpush1.msra.mxu0 %v834
    %886 = vmatprep.subr.mxu0 0.0
    %887 = vmatpush1.msra.mxu0 %v833
    %888 = vmatprep.subr.mxu0 0.0
    %889 = vmatpush2.msra.mxu0 0.0
    %890 = vmatprep.subr.mxu0 0.0
    %891 = vmatpush2.msra.mxu0 0.0
    %892 = vmatprep.subr.mxu0 0.0
    %893 = vmatpush2.msra.mxu0 0.0
    %894 = vmatprep.subr.mxu0 0.0
    %895 = vmatpush2.msra.mxu0 0.0
    %896 = vmatprep.subr.mxu0 0.0
    %897 = vmatpush2.msra.mxu0 0.0
    %898 = vmatprep.subr.mxu0 0.0
    %899 = vmatpush2.msra.mxu0 0.0
    %900 = vmatprep.subr.mxu0 0.0
    %901 = vmatpush2.msra.mxu0 0.0
    %902 = vmatprep.subr.mxu0 0.0
    %903 = vmatpush2.msra.mxu0 0.0
    %904 = vmatprep.subr.mxu0 0.0
    %905 = vmatpush2.msra.mxu0 0.0
    %906 = vmatprep.subr.mxu0 0.0
    %907 = vmatpush2.msra.mxu0 0.0
    %908 = vmatprep.subr.mxu0 0.0
    %909 = vmatpush2.msra.mxu0 0.0
    %910 = vmatprep.subr.mxu0 0.0
    %911 = vmatpush2.msra.mxu0 0.0
    %912 = vmatprep.subr.mxu0 0.0
    %913 = vmatpush2.msra.mxu0 0.0
    %914 = vmatprep.subr.mxu0 0.0
    %915 = vmatpush2.msra.mxu0 0.0
    %916 = vmatprep.subr.mxu0 0.0
    %917 = vmatpush2.msra.mxu0 0.0
    %918 = vmatprep.subr.mxu0 0.0
    %919 = vmatpush2.msra.mxu0 0.0
    %920 = vmatprep.mubr.f32.mxu0 0.0
    %921 = vmatmul.mubr.f32.gmra.mxu0 %v811
    %v922 = vpop.f32.mrf.mxu0
    %v923 = vadd.f32 %v854, %v922
    %v924 = vpop.f32.mrf.mxu0
    %925 = vmatprep.mubr.f32.mxu0 0.0
    %926 = vmatmul.mubr.f32.gmra.mxu0 %v812
    %v927 = vpop.f32.mrf.mxu0
    %v928 = vadd.f32 %v854, %v927
    %v929 = vpop.f32.mrf.mxu0
    %930 = vmatprep.mubr.f32.mxu0 0.0
    %931 = vmatmul.mubr.f32.gmra.mxu0 %v813
    %v932 = vpop.f32.mrf.mxu0
    %v933 = vadd.f32 %v854, %v932
    %v934 = vpop.f32.mrf.mxu0
    %935 = vmatprep.mubr.f32.mxu0 0.0
    %936 = vmatmul.mubr.f32.gmra.mxu0 %v814
    %v937 = vpop.f32.mrf.mxu0
    %v938 = vadd.f32 %v854, %v937
    %v939 = vpop.f32.mrf.mxu0
    %940 = vmatprep.mubr.f32.mxu0 0.0
    %941 = vmatmul.mubr.f32.gmra.mxu0 %v815
    %v942 = vpop.f32.mrf.mxu0
    %v943 = vadd.f32 %v854, %v942
    %v944 = vpop.f32.mrf.mxu0
    %945 = vmatprep.mubr.f32.mxu0 0.0
    %946 = vmatmul.mubr.f32.gmra.mxu0 %v816
    %v947 = vpop.f32.mrf.mxu0
    %v948 = vadd.f32 %v854, %v947
    %v949 = vpop.f32.mrf.mxu0
    %950 = vmatprep.mubr.f32.mxu0 0.0
    %951 = vmatmul.mubr.f32.gmra.mxu0 %v817
    %v952 = vpop.f32.mrf.mxu0
    %v953 = vadd.f32 %v854, %v952
    %v954 = vpop.f32.mrf.mxu0
    %955 = vmatprep.mubr.f32.mxu0 0.0
    %956 = vmatmul.mubr.f32.gmra.mxu0 %v818
    %v957 = vpop.f32.mrf.mxu0
    %v958 = vadd.f32 %v854, %v957
    %v959 = vpop.f32.mrf.mxu0
    %960 = vmatprep.mubr.f32.mxu0 0.0
    %961 = vmatmul.mubr.f32.gmra.mxu0 %v819
    %v962 = vpop.f32.mrf.mxu0
    %v963 = vadd.f32 %v854, %v962
    %v964 = vpop.f32.mrf.mxu0
    %965 = vmatprep.mubr.f32.mxu0 0.0
    %966 = vmatmul.mubr.f32.gmra.mxu0 %v820
    %v967 = vpop.f32.mrf.mxu0
    %v968 = vadd.f32 %v854, %v967
    %v969 = vpop.f32.mrf.mxu0
    %970 = vmatprep.mubr.f32.mxu0 0.0
    %971 = vmatmul.mubr.f32.gmra.mxu0 %v821
    %v972 = vpop.f32.mrf.mxu0
    %v973 = vadd.f32 %v854, %v972
    %v974 = vpop.f32.mrf.mxu0
    %975 = vmatprep.mubr.f32.mxu0 0.0
    %976 = vmatmul.mubr.f32.gmra.mxu0 %v822
    %v977 = vpop.f32.mrf.mxu0
    %v978 = vadd.f32 %v854, %v977
    %v979 = vpop.f32.mrf.mxu0
    %980 = vmatprep.mubr.f32.mxu0 0.0
    %981 = vmatmul.mubr.f32.gmra.mxu0 %v823
    %v982 = vpop.f32.mrf.mxu0
    %v983 = vadd.f32 %v854, %v982
    %v984 = vpop.f32.mrf.mxu0
    %985 = vmatprep.mubr.f32.mxu0 0.0
    %986 = vmatmul.mubr.f32.gmra.mxu0 %v824
    %v987 = vpop.f32.mrf.mxu0
    %v988 = vadd.f32 %v854, %v987
    %v989 = vpop.f32.mrf.mxu0
    %990 = vmatprep.mubr.f32.mxu0 0.0
    %991 = vmatmul.mubr.f32.gmra.mxu0 %v825
    %v992 = vpop.f32.mrf.mxu0
    %v993 = vadd.f32 %v854, %v992
    %v994 = vpop.f32.mrf.mxu0
    %995 = vmatprep.mubr.f32.mxu0 0.0
    %996 = vmatmul.mubr.f32.gmra.mxu0 %v826
    %v997 = vpop.f32.mrf.mxu0
    %v998 = vadd.f32 %v854, %v997
    %v999 = vpop.f32.mrf.mxu0
    %1000 = vmatprep.mubr.f32.mxu0 0.0
    %1001 = vmatmul.mubr.f32.gmra.mxu0 %v827
    %v1002 = vpop.f32.mrf.mxu0
    %v1003 = vadd.f32 %v854, %v1002
    %v1004 = vpop.f32.mrf.mxu0
    %1005 = vmatprep.mubr.f32.mxu0 0.0
    %1006 = vmatmul.mubr.f32.gmra.mxu0 %v828
    %v1007 = vpop.f32.mrf.mxu0
    %v1008 = vadd.f32 %v854, %v1007
    %v1009 = vpop.f32.mrf.mxu0
    %1010 = vmatprep.mubr.f32.mxu0 0.0
    %1011 = vmatmul.mubr.f32.gmra.mxu0 %v829
    %v1012 = vpop.f32.mrf.mxu0
    %v1013 = vadd.f32 %v854, %v1012
    %v1014 = vpop.f32.mrf.mxu0
    %1015 = vmatprep.mubr.f32.mxu0 0.0
    %1016 = vmatmul.mubr.f32.gmra.mxu0 %v830
    %v1017 = vpop.f32.mrf.mxu0
    %v1018 = vadd.f32 %v854, %v1017
    %v1019 = vpop.f32.mrf.mxu0
    %1020 = vmatprep.mubr.f32.mxu0 0.0
    %1021 = vmatmul.mubr.f32.gmra.mxu0 %v831
    %v1022 = vpop.f32.mrf.mxu0
    %v1023 = vadd.f32 %v854, %v1022
    %v1024 = vpop.f32.mrf.mxu0
    %1025 = vmatprep.mubr.f32.mxu0 0.0
    %1026 = vmatmul.mubr.f32.gmra.mxu0 %v832
    %v1027 = vpop.f32.mrf.mxu0
    %v1028 = vadd.f32 %v854, %v1027
    %v1029 = vpop.f32.mrf.mxu0
    %1030 = vdwg.mxu0
    %1031 = vst [vmem:[#allocation2] sm:$0xff] %v923
    %1032 = vst [vmem:[#allocation2 + $0x8] sm:$0xff] %v928
    %1033 = vst [vmem:[#allocation2 + $0x10] sm:$0xff] %v933
    %1034 = vst [vmem:[#allocation2 + $0x18] sm:$0xff] %v938
    %1035 = vst [vmem:[#allocation2 + $0x20] sm:$0xff] %v943
    %1036 = vst [vmem:[#allocation2 + $0x28] sm:$0xff] %v948
    %1037 = vst [vmem:[#allocation2 + $0x30] sm:$0xff] %v953
    %1038 = vst [vmem:[#allocation2 + $0x38] sm:$0xff] %v958
    %1039 = vst [vmem:[#allocation2 + $0x40] sm:$0xff] %v963
    %1040 = vst [vmem:[#allocation2 + $0x48] sm:$0xff] %v968
    %1041 = vst [vmem:[#allocation2 + $0x50] sm:$0xff] %v973
    %1042 = vst [vmem:[#allocation2 + $0x58] sm:$0xff] %v978
    %1043 = vst [vmem:[#allocation2 + $0x60] sm:$0xff] %v983
    %1044 = vst [vmem:[#allocation2 + $0x68] sm:$0xff] %v988
    %1045 = vst [vmem:[#allocation2 + $0x70] sm:$0xff] %v993
    %1046 = vst [vmem:[#allocation2 + $0x78] sm:$0xff] %v998
    %1047 = vst [vmem:[#allocation2 + $0x80] sm:$0xff] %v1003
    %1048 = vst [vmem:[#allocation2 + $0x88] sm:$0xff] %v1008
    %1049 = vst [vmem:[#allocation2 + $0x90] sm:$0xff] %v1013
    %1050 = vst [vmem:[#allocation2 + $0x98] sm:$0xff] %v1018
    %1051 = vst [vmem:[#allocation2 + $0xa0] sm:$0xff] %v1023
    %1052 = vst [vmem:[#allocation2 + $0xa8] sm:$0xff] %v1028
    // Predicated region
    $region38: #{tpu_custom_call.1} parent=1 // pred_check
      _
    $region39: #{tpu_custom_call.1} parent=1 // pred_check_branch
      %1054 = sbr.rel (0) target = $region41
    $region40: #{tpu_custom_call.1} parent=1 // pred_region
      %s1056 = ssub.s32 2816, 2816
      %1057 = vsyncadd [#allocation3], %s1056
      %s1058 = sshll.u32 [#allocation2], 4
      %s1059 = int_to_ptr.vmem [resolvable:$true] %s1058
      %1064 = dma.vmem_to_hbm [thread:$0]  %s1059, 2816, %s9, [#allocation3], 128, 128, 8
    $region41: #{tpu_custom_call.1} parent=1 // pred_fallthru
      _
    // Predicated region
    $region42: #{tpu_custom_call.1} parent=1 // pred_check
      _
    $region43: #{tpu_custom_call.1} parent=1 // pred_check_branch
      %1066 = sbr.rel (0) target = $region45
    $region44: #{tpu_custom_call.1} parent=1 // pred_region
      %1067 = dma.done [#allocation3], 2816
    $region45: #{tpu_custom_call.1} parent=1 // pred_fallthru
      _
    %1068 = vsyncpa [#allocation3], 1

</llo_original>
